<compile_context>
chip_gen: v6e
topology: v6e:2x2x1
jax: 0.10.0
libtpu: 0.0.40
codegen_flags: <defaults>
</compile_context>

<pallas_src>
import functools

import jax
import jax.numpy as jnp
from jax.experimental import pallas as pl
from jax.experimental.pallas import tpu as pltpu


# ----------------------------------------------------------------------------
# Pallas GEMM kernels: bf16 inputs, f32 accumulate, fused bias/ReLU/residual
# ----------------------------------------------------------------------------
def _gemm_kernel(a_ref, b_ref, bias_ref, o_ref, *, relu):
    r = jnp.dot(a_ref[...], b_ref[...], preferred_element_type=jnp.float32)
    r = r + bias_ref[...]
    if relu:
        r = jnp.maximum(r, 0.0)
    o_ref[...] = r.astype(o_ref.dtype)


def _gemm_residual_kernel(a_ref, b_ref, bias_ref, res_ref, o_ref):
    r = jnp.dot(a_ref[...], b_ref[...], preferred_element_type=jnp.float32)
    r = r + bias_ref[...] + res_ref[...].astype(jnp.float32)
    o_ref[...] = jnp.maximum(r, 0.0).astype(o_ref.dtype)


def pallas_matmul(a, w, bias, relu=False, residual=None,
                  out_dtype=jnp.bfloat16):
    """epilogue(a @ w + bias).  a:(M,K), w:(K,N) bf16, bias:(1,N) f32.

    If `residual` (logical shape (M, N)) is given, the epilogue is
    relu(acc + bias + residual).  K is kept whole (no k-loop)."""
    M, K = a.shape
    K2, N = w.shape
    assert K == K2, (K, K2)

    tm = min(128, ((M + 7) // 8) * 8)           # size tm to the real M
    Mp = ((M + tm - 1) // tm) * tm
    if N % 256 == 0:
        tn = 256                                 # feed the 256-wide MXUs
    elif N % 128 == 0:
        tn = 128
    else:
        tn = N                                   # small N (40 / 64): full block

    a = a.astype(jnp.bfloat16)
    if Mp > M:
        a = jnp.pad(a, ((0, Mp - M), (0, 0)))

    in_specs = [
        pl.BlockSpec((tm, K), lambda i, j: (i, 0)),
        pl.BlockSpec((K, tn), lambda i, j: (0, j)),
        pl.BlockSpec((1, tn), lambda i, j: (0, j)),
    ]
    args = [a, w, bias]
    if residual is None:
        kernel = functools.partial(_gemm_kernel, relu=relu)
    else:
        r = residual.reshape(M, N).astype(jnp.bfloat16)
        if Mp > M:
            r = jnp.pad(r, ((0, Mp - M), (0, 0)))
        in_specs.append(pl.BlockSpec((tm, tn), lambda i, j: (i, j)))
        args.append(r)
        kernel = _gemm_residual_kernel

    out = pl.pallas_call(
        kernel,
        out_shape=jax.ShapeDtypeStruct((Mp, N), out_dtype),
        grid=(Mp // tm, N // tn),
        in_specs=in_specs,
        out_specs=pl.BlockSpec((tm, tn), lambda i, j: (i, j)),
        compiler_params=pltpu.CompilerParams(
            dimension_semantics=("parallel", "parallel")),
    )(*args)
    if Mp > M:
        out = out[:M]
    return out


# ----------------------------------------------------------------------------
# 3x3 stride-2 max-pool (pad 1) via 4 parity planes + per-image Pallas kernel
# ----------------------------------------------------------------------------
def _maxpool_kernel(ee_ref, eo_ref, oe_ref, oo_ref, o_ref):
    Ho, Wo = o_ref.shape[1], o_ref.shape[2]
    ee = ee_ref[0]
    eo = eo_ref[0]
    oe = oe_ref[0]
    oo = oo_ref[0]
    r = jnp.maximum(ee[:Ho, :Wo], eo[:Ho, :Wo])          # taps (0,0), (0,1)
    r = jnp.maximum(r, ee[:Ho, 1:Wo + 1])                # (0,2)
    r = jnp.maximum(r, oe[:Ho, :Wo])                     # (1,0)
    r = jnp.maximum(r, oo[:Ho, :Wo])                     # (1,1)
    r = jnp.maximum(r, oe[:Ho, 1:Wo + 1])                # (1,2)
    r = jnp.maximum(r, ee[1:Ho + 1, :Wo])                # (2,0)
    r = jnp.maximum(r, eo[1:Ho + 1, :Wo])                # (2,1)
    r = jnp.maximum(r, ee[1:Ho + 1, 1:Wo + 1])           # (2,2)
    o_ref[0] = r.astype(o_ref.dtype)


def maxpool_3x3_s2(x):
    """3x3 max-pool, stride 2, padding 1 (NHWC, even H/W)."""
    N, H, W, C = x.shape
    assert H % 2 == 0 and W % 2 == 0, (H, W)
    Ho, Wo = H // 2, W // 2
    xp = jnp.pad(x, ((0, 0), (1, 1), (1, 1), (0, 0)),
                 constant_values=-jnp.inf)
    # Parity planes, each (N, Ho+1, Wo+1, C): ~1x HBM traffic instead of 9x.
    ee = xp[:, 0::2, 0::2, :]
    eo = xp[:, 0::2, 1::2, :]
    oe = xp[:, 1::2, 0::2, :]
    oo = xp[:, 1::2, 1::2, :]
    spec_in = pl.BlockSpec((1, Ho + 1, Wo + 1, C), lambda n: (n, 0, 0, 0))
    return pl.pallas_call(
        _maxpool_kernel,
        out_shape=jax.ShapeDtypeStruct((N, Ho, Wo, C), x.dtype),
        grid=(N,),
        in_specs=[spec_in] * 4,
        out_specs=pl.BlockSpec((1, Ho, Wo, C), lambda n: (n, 0, 0, 0)),
        compiler_params=pltpu.CompilerParams(
            dimension_semantics=("parallel",)),
    )(ee, eo, oe, oo)


# ----------------------------------------------------------------------------
# Global average pool, tiled over channel blocks
# ----------------------------------------------------------------------------
def _avgpool_kernel(x_ref, o_ref):
    o_ref[...] = jnp.mean(x_ref[...].astype(jnp.float32),
                          axis=1).astype(o_ref.dtype)


def pallas_global_avgpool(x):
    """Adaptive average pool to (1,1): (N,H,W,C) -> (N,C)."""
    N, H, W, C = x.shape
    x3 = x.reshape(N, H * W, C)
    tc = 512 if C % 512 == 0 else C
    return pl.pallas_call(
        _avgpool_kernel,
        out_shape=jax.ShapeDtypeStruct((N, C), x.dtype),
        grid=(C // tc,),
        in_specs=[pl.BlockSpec((N, H * W, tc), lambda j: (0, 0, j))],
        out_specs=pl.BlockSpec((N, tc), lambda j: (0, j)),
        compiler_params=pltpu.CompilerParams(
            dimension_semantics=("parallel",)),
    )(x3)


# ----------------------------------------------------------------------------
# Conv = (optional) im2col in bf16 + Pallas GEMM with BN/ReLU/residual fused
# ----------------------------------------------------------------------------
def _extract_patches(x, kh, kw, stride, pad):
    N, H, W, C = x.shape
    Ho = (H + 2 * pad - kh) // stride + 1
    Wo = (W + 2 * pad - kw) // stride + 1
    xp = jnp.pad(x, ((0, 0), (pad, pad), (pad, pad), (0, 0)))
    cols = []
    for dy in range(kh):
        for dx in range(kw):
            cols.append(xp[:, dy:dy + stride * (Ho - 1) + 1:stride,
                           dx:dx + stride * (Wo - 1) + 1:stride, :])
    p = jnp.stack(cols, axis=3)                        # (N,Ho,Wo,kh*kw,C) bf16
    return p.reshape(N * Ho * Wo, kh * kw * C), (N, Ho, Wo)


def conv_bn(x, cw, ksize, stride=1, pad=0, relu=True, residual=None):
    """Pre-folded conv+BN (+ReLU / fused residual add+ReLU).  NHWC in/out."""
    w, b = cw["w"], cw["b"]
    cout = w.shape[1]
    if ksize == 1 and pad == 0:
        if stride > 1:
            x = x[:, ::stride, ::stride, :]
        N, H, W, C = x.shape
        a = x.reshape(N * H * W, C)
        shape = (N, H, W)
    else:
        a, shape = _extract_patches(x, ksize, ksize, stride, pad)
    Kp = w.shape[0]
    if Kp > a.shape[1]:                      # K padded to x128 at prep time
        a = jnp.pad(a, ((0, 0), (0, Kp - a.shape[1])))
    out = pallas_matmul(a, w, b, relu=relu, residual=residual)
    N, Ho, Wo = shape
    return out.reshape(N, Ho, Wo, cout)


# ----------------------------------------------------------------------------
# Deterministic parameter initialization (synthetic ResNet-50) + inference prep
# ----------------------------------------------------------------------------
def _init_conv(key, cout, cin, kh, kw):
    std = (2.0 / (cin * kh * kw)) ** 0.5
    return jax.random.normal(key, (cout, cin, kh, kw), jnp.float32) * std


def _init_bn(key, c):
    k1, k2, k3, k4 = jax.random.split(key, 4)
    gamma = 1.0 + 0.1 * jax.random.normal(k1, (c,), jnp.float32)
    beta = 0.1 * jax.random.normal(k2, (c,), jnp.float32)
    mean = 0.1 * jax.random.normal(k3, (c,), jnp.float32)
    var = 1.0 + 0.1 * jnp.abs(jax.random.normal(k4, (c,), jnp.float32))
    return gamma, beta, mean, var


LAYER_CFG = [(64, 3, 1), (128, 4, 2), (256, 6, 2), (512, 3, 2)]


def make_resnet50_params(key, num_classes=40):
    keys = iter(jax.random.split(key, 256))
    params = {
        "conv1": _init_conv(next(keys), 64, 3, 7, 7),
        "bn1": _init_bn(next(keys), 64),
    }
    in_c = 64
    for li, (planes, nblocks, _stride) in enumerate(LAYER_CFG, start=1):
        blocks = []
        for b in range(nblocks):
            blk = {
                "conv1": _init_conv(next(keys), planes, in_c, 1, 1),
                "bn1": _init_bn(next(keys), planes),
                "conv2": _init_conv(next(keys), planes, planes, 3, 3),
                "bn2": _init_bn(next(keys), planes),
                "conv3": _init_conv(next(keys), planes * 4, planes, 1, 1),
                "bn3": _init_bn(next(keys), planes * 4),
            }
            if b == 0:
                blk["down_conv"] = _init_conv(next(keys), planes * 4, in_c, 1, 1)
                blk["down_bn"] = _init_bn(next(keys), planes * 4)
            blocks.append(blk)
            in_c = planes * 4
        params[f"layer{li}"] = blocks
    kw_, kb_ = jax.random.split(next(keys))
    params["fc_w"] = jax.random.normal(kw_, (num_classes, 2048),
                                       jnp.float32) * (1.0 / 2048) ** 0.5
    params["fc_b"] = 0.01 * jax.random.normal(kb_, (num_classes,), jnp.float32)
    return params


def _fold_conv_bn(w, bn, eps=1e-5):
    """Fold eval-mode BN into the conv; emit GEMM-ready (Kpad, Cout) bf16 W."""
    gamma, beta, mean, var = bn
    scale = gamma / jnp.sqrt(var + eps)
    bias = beta - mean * scale
    cout, cin, kh, kw = w.shape
    w_fold = w * scale[:, None, None, None]
    w_mat = jnp.transpose(w_fold, (2, 3, 1, 0)).reshape(kh * kw * cin, cout)
    K = w_mat.shape[0]
    Kp = ((K + 127) // 128) * 128
    if Kp > K:
        w_mat = jnp.pad(w_mat, ((0, Kp - K), (0, 0)))
    return {"w": w_mat.astype(jnp.bfloat16),
            "b": bias.reshape(1, cout).astype(jnp.float32)}


def prepare_for_inference(raw):
    prep = {"stem": _fold_conv_bn(raw["conv1"], raw["bn1"]), "layers": []}
    for li in range(1, 5):
        layer = []
        for blk in raw[f"layer{li}"]:
            p = {"c1": _fold_conv_bn(blk["conv1"], blk["bn1"]),
                 "c2": _fold_conv_bn(blk["conv2"], blk["bn2"]),
                 "c3": _fold_conv_bn(blk["conv3"], blk["bn3"])}
            if "down_conv" in blk:
                p["down"] = _fold_conv_bn(blk["down_conv"], blk["down_bn"])
            layer.append(p)
        prep["layers"].append(layer)
    prep["fc"] = {"w": jnp.transpose(raw["fc_w"]).astype(jnp.bfloat16),
                  "b": raw["fc_b"].reshape(1, -1).astype(jnp.float32)}
    return prep


# ----------------------------------------------------------------------------
# Forward pass (matches torchvision ResNet-50 v1.5 structure, eval mode)
# ----------------------------------------------------------------------------
def bottleneck(x, blk, stride):
    if "down" in blk:
        identity = conv_bn(x, blk["down"], ksize=1, stride=stride, pad=0,
                           relu=False)
    else:
        identity = x
    out = conv_bn(x, blk["c1"], ksize=1, stride=1, pad=0, relu=True)
    out = conv_bn(out, blk["c2"], ksize=3, stride=stride, pad=1, relu=True)
    # residual add + ReLU fused into the conv3 GEMM epilogue
    out = conv_bn(out, blk["c3"], ksize=1, stride=1, pad=0, relu=False,
                  residual=identity)
    return out


def celeba_model_forward(params, x_nchw):
    # layout: accept NCHW (PyTorch convention); NHWC + bf16 internally.
    x = jnp.transpose(x_nchw, (0, 2, 3, 1)).astype(jnp.bfloat16)
    x = conv_bn(x, params["stem"], ksize=7, stride=2, pad=3, relu=True)
    x = maxpool_3x3_s2(x)
    for (_planes, _nblocks, first_stride), layer in zip(LAYER_CFG,
                                                        params["layers"]):
        for b, blk in enumerate(layer):
            s = first_stride if b == 0 else 1
            x = bottleneck(x, blk, s)
    x = pallas_global_avgpool(x)                          # (N, 2048) bf16
    logits = pallas_matmul(x, params["fc"]["w"], params["fc"]["b"],
                           relu=False, out_dtype=jnp.float32)   # (N, 40)
    return logits


# ----------------------------------------------------------------------------
if __name__ == "__main__":
    key = jax.random.PRNGKey(0)
    k_params, k_input = jax.random.split(key)

    raw_params = make_resnet50_params(k_params, num_classes=40)
    params = prepare_for_inference(raw_params)

    # Small-but-valid input: ResNet-50 with adaptive avg-pool accepts any
    # spatial size that survives the 5 downsamplings; 32x32 -> 1x1 at layer4.
    x = jax.random.normal(k_input, (2, 3, 32, 32), jnp.float32)

    logits = celeba_model_forward(params, x)
    logits = jax.block_until_ready(logits)

    assert logits.shape == (2, 40), logits.shape
    assert bool(jnp.all(jnp.isfinite(logits)))
    print("KERNEL_OK")
</pallas_src>

<mosaic_0001>
module attributes {stable_mosaic.version = 11 : i64} {
  func.func @_gemm_kernel(%arg0: i32, %arg1: i32, %arg2: memref<128x256xbf16, #tpu.memory_space<vmem>>, %arg3: memref<256x64xbf16, #tpu.memory_space<vmem>>, %arg4: memref<1x64xf32, #tpu.memory_space<vmem>>, %arg5: memref<128x64xbf16, #tpu.memory_space<vmem>>) attributes {dimension_semantics = [#tpu.dimension_semantics<parallel>, #tpu.dimension_semantics<parallel>], iteration_bounds = array<i64: 4, 1>, scalar_prefetch = 0 : i64, scratch_operands = 0 : i64, tpu.core_type = #tpu.core_type<tc>, window_params = [{transform_indices = @transform_0, window_bounds = array<i64: 128, 256>}, {transform_indices = @transform_1, window_bounds = array<i64: 256, 64>}, {transform_indices = @transform_2, window_bounds = array<i64: 1, 64>}, {transform_indices = @transform_3, window_bounds = array<i64: 128, 64>}]} {
    %c0 = arith.constant 0 : index
    %c0_0 = arith.constant 0 : index
    %0 = vector.load %arg2[%c0, %c0_0] : memref<128x256xbf16, #tpu.memory_space<vmem>>, vector<128x256xbf16>
    %c0_1 = arith.constant 0 : index
    %c0_2 = arith.constant 0 : index
    %1 = vector.load %arg3[%c0_1, %c0_2] : memref<256x64xbf16, #tpu.memory_space<vmem>>, vector<256x64xbf16>
    %cst = arith.constant dense<0.000000e+00> : vector<128x64xf32>
    %2 = tpu.matmul %0, %1, %cst {dimension_numbers = #tpu.dot_dimension_numbers<[1], [0], [0], [1], [0, 0, 1, 1], [], []>} : vector<128x256xbf16>, vector<256x64xbf16>, vector<128x64xf32> -> vector<128x64xf32>
    %c0_3 = arith.constant 0 : index
    %c0_4 = arith.constant 0 : index
    %3 = vector.load %arg4[%c0_3, %c0_4] : memref<1x64xf32, #tpu.memory_space<vmem>>, vector<1x64xf32>
    %4 = vector.broadcast %3 : vector<1x64xf32> to vector<128x64xf32>
    %5 = arith.addf %2, %4 : vector<128x64xf32>
    %cst_5 = arith.constant 0.000000e+00 : f32
    %6 = vector.broadcast %cst_5 : f32 to vector<128x64xf32>
    %7 = arith.maximumf %5, %6 : vector<128x64xf32>
    %8 = arith.truncf %7 : vector<128x64xf32> to vector<128x64xbf16>
    %c0_6 = arith.constant 0 : index
    %c0_7 = arith.constant 0 : index
    %9 = vector.load %arg5[%c0_6, %c0_7] : memref<128x64xbf16, #tpu.memory_space<vmem>>, vector<128x64xbf16>
    tpu.vector_store %arg5[%c0_6, %c0_7], %8 {strides = array<i32>} : memref<128x64xbf16, #tpu.memory_space<vmem>>, vector<128x64xbf16>,
    return
  }
  func.func @transform_0(%arg0: i32, %arg1: i32) -> (i32, i32) {
    %c0_i32 = arith.constant 0 : i32
    %c0_i32_0 = arith.constant 0 : i32
    return %arg0, %c0_i32 : i32, i32
  }
  func.func @transform_1(%arg0: i32, %arg1: i32) -> (i32, i32) {
    %c0_i32 = arith.constant 0 : i32
    %c0_i32_0 = arith.constant 0 : i32
    return %c0_i32, %arg1 : i32, i32
  }
  func.func @transform_2(%arg0: i32, %arg1: i32) -> (i32, i32) {
    %c0_i32 = arith.constant 0 : i32
    %c0_i32_0 = arith.constant 0 : i32
    return %c0_i32, %arg1 : i32, i32
  }
  func.func @transform_3(%arg0: i32, %arg1: i32) -> (i32, i32) {
    %c0_i32 = arith.constant 0 : i32
    return %arg0, %arg1 : i32, i32
  }
}

</mosaic_0001>

<llo_original>
// kernel: tpu_custom_call.1
$region0: #{tpu_custom_call.1}
  #allocation0 [shape = 'u32[]', space=smem, size = 0x4, offset = 0x4, fixed_abs, tag = 'smem constant byte address 0x4 - core index']
  #allocation1 [shape = 'u32[144,128]{1,0:T(1,128)}', space=vmem, size = 0x12000, scoped, tag = 'internal scratch']
  %s0 = inlined_call_operand.hbm [shape: bf16[512,256], index: 0, kind: input, shape index: {}]
  %s1 = inlined_call_operand.vmem [shape: bf16[256,64], index: 1, kind: input, shape index: {}]
  %s2 = inlined_call_operand.vmem [shape: f32[1,64], index: 2, kind: input, shape index: {}]
  %s3 = inlined_call_operand.vmem [shape: bf16[512,64], index: 3, kind: output, shape index: {}]
  %s4 = sld [smem:[#allocation0]]
  $region49: #{tpu_custom_call.1} parent=0
    _
  %s6 = ssub.s32 1, %s4
  %s7 = scalar_select 0, %s6, %s4
  $region1: #{tpu_custom_call.1} parent=0
    #allocation2 [shape = 'u8[131072]{0}', space=vmem, size = 0x20000, scoped, tag = 'input window, operand 0']
    #allocation3 [shape = 's32[2]{0}', space=sflag, size = 0x8, scoped, tag = 'scoped memory for tpu_custom_call.1']
    %8 = vsyncpa [#allocation3], 0
    %s9 = scalar_lea.sflag [#allocation3], 1
    %10 = vsyncpa %s9, 0
    loop: start=0, step=1, limit=6
    $region2: #{tpu_custom_call.1} parent=1 // loop_pre_header
      _
    $region3: #{tpu_custom_call.1} parent=1 // loop_header
      %s12 = sphi 0, %s16
      %p13 = scmp.ge.s32.totalorder %s12, 6
      %s19 = sphi 0, %s31
      %s20 = sphi 0, %s27
      %s21 = sphi 0, %s19
      %s22 = sphi 0, %s20
      %s23 = sphi 0, %s21
      %s24 = sphi 0, %s22
      %s34 = sphi 0, %s36
      %s37 = sphi 0, %s34
      %s38 = sphi 0, %s37
      %s54 = sphi 0, %s38
      %s60 = sphi 0, %s62
      %s63 = sphi 0, %s60
      %s64 = sphi 0, %s63
      %s80 = sphi 0, %s64
      %s86 = sphi 0, %s88
      %s89 = sphi 0, %s86
      %s90 = sphi 0, %s89
      %s106 = sphi 0, %s90
      %s114 = sphi 0, %s116
      %s117 = sphi 0, %s114
      %s118 = sphi 0, %s117
      %s134 = sphi 0, %s118
    $region4: #{tpu_custom_call.1} parent=1 // loop_header_branch
      %15 = sbr.rel (%p13) target = $region8
    $region5: #{tpu_custom_call.1} parent=1 // loop_body
      %s17 = ssub.s32 %s12, 1
      %s18 = ssub.s32 %s12, 2
      %s25 = sadd.s32 1, %s20
      %p26 = scmp.ge.s32.totalorder %s25, 1
      %s27 = scalar_select %p26, 0, %s25
      %s28 = sadd.s32 1, %s19
      %s29 = scalar_select %p26, %s28, %s19
      %p30 = scmp.ge.s32.totalorder %s29, 4
      %s31 = scalar_select %p30, 0, %s29
      %s32 = ssub.s32 %s19, %s31
      %p33 = scmp.eq.s32.totalorder %s32, 0
      %s35 = sadd.s32 %s34, 1
      %s36 = scalar_select %p33, %s34, %s35
      %p39 = pneg %p33
      %p40 = scmp.eq.s32.totalorder %s12, 3
      %p41 = por %p39, %p40
      %p42 = scmp.ne.s32.totalorder %s34, %s37
      %p43 = scmp.eq.s32.totalorder %s12, 0
      %p44 = por %p42, %p43
      %p45 = scmp.ne.s32.totalorder %s34, %s37
      %p46 = scmp.eq.s32.totalorder %s17, 3
      %p47 = por %p45, %p46
      %p48 = scmp.ne.s32.totalorder %s37, %s38
      %p49 = scmp.eq.s32.totalorder %s17, 0
      %p50 = por %p48, %p49
      %p51 = scmp.ne.s32.totalorder %s37, %s38
      %p52 = scmp.eq.s32.totalorder %s18, 3
      %p53 = por %p51, %p52
      %p55 = scmp.ne.s32.totalorder %s38, %s54
      %p56 = scmp.eq.s32.totalorder %s18, 0
      %p57 = por %p55, %p56
      %s58 = ssub.s32 %s20, %s27
      %p59 = scmp.eq.s32.totalorder %s58, 0
      %s61 = sadd.s32 %s60, 1
      %s62 = scalar_select %p59, %s60, %s61
      %p65 = pneg %p59
      %p66 = scmp.eq.s32.totalorder %s12, 3
      %p67 = por %p65, %p66
      %p68 = scmp.ne.s32.totalorder %s60, %s63
      %p69 = scmp.eq.s32.totalorder %s12, 0
      %p70 = por %p68, %p69
      %p71 = scmp.ne.s32.totalorder %s60, %s63
      %p72 = scmp.eq.s32.totalorder %s17, 3
      %p73 = por %p71, %p72
      %p74 = scmp.ne.s32.totalorder %s63, %s64
      %p75 = scmp.eq.s32.totalorder %s17, 0
      %p76 = por %p74, %p75
      %p77 = scmp.ne.s32.totalorder %s63, %s64
      %p78 = scmp.eq.s32.totalorder %s18, 3
      %p79 = por %p77, %p78
      %p81 = scmp.ne.s32.totalorder %s64, %s80
      %p82 = scmp.eq.s32.totalorder %s18, 0
      %p83 = por %p81, %p82
      %s84 = ssub.s32 %s20, %s27
      %p85 = scmp.eq.s32.totalorder %s84, 0
      %s87 = sadd.s32 %s86, 1
      %s88 = scalar_select %p85, %s86, %s87
      %p91 = pneg %p85
      %p92 = scmp.eq.s32.totalorder %s12, 3
      %p93 = por %p91, %p92
      %p94 = scmp.ne.s32.totalorder %s86, %s89
      %p95 = scmp.eq.s32.totalorder %s12, 0
      %p96 = por %p94, %p95
      %p97 = scmp.ne.s32.totalorder %s86, %s89
      %p98 = scmp.eq.s32.totalorder %s17, 3
      %p99 = por %p97, %p98
      %p100 = scmp.ne.s32.totalorder %s89, %s90
      %p101 = scmp.eq.s32.totalorder %s17, 0
      %p102 = por %p100, %p101
      %p103 = scmp.ne.s32.totalorder %s89, %s90
      %p104 = scmp.eq.s32.totalorder %s18, 3
      %p105 = por %p103, %p104
      %p107 = scmp.ne.s32.totalorder %s90, %s106
      %p108 = scmp.eq.s32.totalorder %s18, 0
      %p109 = por %p107, %p108
      %s110 = ssub.s32 %s19, %s31
      %s111 = ssub.s32 %s20, %s27
      %s112 = sor.u32 %s110, %s111
      %p113 = scmp.eq.s32.totalorder %s112, 0
      %s115 = sadd.s32 %s114, 1
      %s116 = scalar_select %p113, %s114, %s115
      %p119 = pneg %p113
      %p120 = scmp.eq.s32.totalorder %s12, 3
      %p121 = por %p119, %p120
      %p122 = scmp.ne.s32.totalorder %s114, %s117
      %p123 = scmp.eq.s32.totalorder %s12, 0
      %p124 = por %p122, %p123
      %p125 = scmp.ne.s32.totalorder %s114, %s117
      %p126 = scmp.eq.s32.totalorder %s17, 3
      %p127 = por %p125, %p126
      %p128 = scmp.ne.s32.totalorder %s117, %s118
      %p129 = scmp.eq.s32.totalorder %s17, 0
      %p130 = por %p128, %p129
      %p131 = scmp.ne.s32.totalorder %s117, %s118
      %p132 = scmp.eq.s32.totalorder %s18, 3
      %p133 = por %p131, %p132
      %p135 = scmp.ne.s32.totalorder %s118, %s134
      %p136 = scmp.eq.s32.totalorder %s18, 0
      %p137 = por %p135, %p136
      %p138 = scmp.le.s32.totalorder 1, %s12
      %p139 = scmp.lt.s32.totalorder %s12, 5
      %p140 = pnand %p138, %p139
      %p141 = pneg %p140
      // Predicated region
      $region9: #{tpu_custom_call.1} parent=5 // pred_check
        _
      $region10: #{tpu_custom_call.1} parent=5 // pred_check_branch
        %143 = sbr.rel (%p140) target = $region12
      $region11: #{tpu_custom_call.1} parent=5 // pred_region
        %s144 = ssub.s32 %s12, 1
        // Predicated region
        $region13: #{tpu_custom_call.1} parent=11 // pred_check
          %p145 = pneg %p76
        $region14: #{tpu_custom_call.1} parent=11 // pred_check_branch
          %147 = sbr.rel (%p145) target = $region16
        $region15: #{tpu_custom_call.1} parent=11 // pred_region
          %p148 = scmp.lt.s32.totalorder %s22, 0
          %s149 = scalar_select %p148, %s22, 0
          %s150 = smul.addr %s149, 4
          %s151 = scalar_lea.vmem %s1, %s150
        $region16: #{tpu_custom_call.1} parent=11 // pred_fallthru
          _
        // Predicated region
        $region17: #{tpu_custom_call.1} parent=11 // pred_check
          %p152 = pneg %p102
        $region18: #{tpu_custom_call.1} parent=11 // pred_check_branch
          %154 = sbr.rel (%p152) target = $region20
        $region19: #{tpu_custom_call.1} parent=11 // pred_region
          %p155 = scmp.lt.s32.totalorder %s22, 0
          %s156 = scalar_select %p155, %s22, 0
          %s157 = scalar_lea.vmem %s2, %s156
        $region20: #{tpu_custom_call.1} parent=11 // pred_fallthru
          _
      $region12: #{tpu_custom_call.1} parent=5 // pred_fallthru
        _
      %p158 = scmp.lt.s32.totalorder %s12, 4
      // Predicated region
      $region21: #{tpu_custom_call.1} parent=5 // pred_check
        %p159 = pneg %p158
      $region22: #{tpu_custom_call.1} parent=5 // pred_check_branch
        %161 = sbr.rel (%p159) target = $region24
      $region23: #{tpu_custom_call.1} parent=5 // pred_region
        // Predicated region
        $region25: #{tpu_custom_call.1} parent=23 // pred_check
          %p162 = pneg %p44
        $region26: #{tpu_custom_call.1} parent=23 // pred_check_branch
          %164 = sbr.rel (%p162) target = $region28
        $region27: #{tpu_custom_call.1} parent=23 // pred_region
          %s165 = sand.u32 %s34, 1
          %s166 = scalar_lea.sflag [#allocation3], %s165
          %s167 = sand.u32 %s34, 1
          %s168 = smul.addr %s167, 128
          %s169 = scalar_lea.vmem [#allocation2], %s168
          %s170 = smul.u32 16, %s19
          %s172 = ssub.s32 2048, 2048
          %173 = vsyncadd %s166, %s172
          %s174 = smul.addr %s170, 2
          %s175 = smul.addr %s174, 64
          %s176 = scalar_lea.hbm %s0, %s175
          %s177 = sshll.u32 %s169, 4
          %s178 = int_to_ptr.vmem [resolvable:$true] %s177
          %183 = dma.hbm_to_vmem [thread:$0]  %s176, 2048, %s178, %s166, 128, 128, 8
        $region28: #{tpu_custom_call.1} parent=23 // pred_fallthru
          _
      $region24: #{tpu_custom_call.1} parent=5 // pred_fallthru
        _
      %p184 = scmp.le.s32.totalorder 1, %s12
      %p185 = scmp.lt.s32.totalorder %s12, 5
      %p186 = pnand %p184, %p185
      %p187 = pneg %p186
      // Predicated region
      $region29: #{tpu_custom_call.1} parent=5 // pred_check
        _
      $region30: #{tpu_custom_call.1} parent=5 // pred_check_branch
        %189 = sbr.rel (%p186) target = $region32
      $region31: #{tpu_custom_call.1} parent=5 // pred_region
        %s190 = ssub.s32 %s12, 1
        %s191 = sand.u32 %s37, 1
        %s192 = scalar_lea.sflag [#allocation3], %s191
        %s193 = sand.u32 %s37, 1
        %s194 = smul.addr %s193, 128
        %s195 = scalar_lea.vmem [#allocation2], %s194
        // Predicated region
        $region33: #{tpu_custom_call.1} parent=31 // pred_check
          %p196 = pneg %p50
        $region34: #{tpu_custom_call.1} parent=31 // pred_check_branch
          %198 = sbr.rel (%p196) target = $region36
        $region35: #{tpu_custom_call.1} parent=31 // pred_region
          %199 = dma.done %s192, 2048
        $region36: #{tpu_custom_call.1} parent=31 // pred_fallthru
          _
        %s200 = sand.u32 %s37, 1
        %s201 = scalar_lea.sflag [#allocation3], %s200
        %s202 = sand.u32 %s37, 1
        %s203 = smul.addr %s202, 128
        %s204 = scalar_lea.vmem [#allocation2], %s203
        %p205 = pneg %p50
        %p206 = pneg %p47
        %p207 = scmp.lt.s32.totalorder %s22, 0
        %s208 = scalar_select %p207, %s22, 0
        %s209 = smul.addr %s208, 4
        %s210 = scalar_lea.vmem %s1, %s209
        %p211 = pneg %p76
        %p212 = pneg %p73
        %p213 = scmp.lt.s32.totalorder %s22, 0
        %s214 = scalar_select %p213, %s22, 0
        %s215 = scalar_lea.vmem %s2, %s214
        %p216 = pneg %p102
        %p217 = pneg %p99
        %p218 = pneg %p130
        %p219 = pneg %p127
        %s220 = smul.u32 16, %s21
        %p221 = scmp.lt.s32.totalorder %s220, 63
        %s222 = scalar_select %p221, %s220, 63
        %p223 = scmp.lt.s32.totalorder %s22, 0
        %s224 = scalar_select %p223, %s22, 0
        %s225 = sadd.s32 %s224, %s222
        %s226 = smul.addr %s225, 4
        %s227 = scalar_lea.vmem %s3, %s226
        %s228 = smul.u32 16, %s21
        %p229 = scmp.lt.s32.totalorder %s22, 0
        %s230 = scalar_select %p229, %s22, 0
        %s231 = smul.addr %s230, 4
        %s232 = scalar_lea.vmem %s1, %s231
        %p233 = scmp.lt.s32.totalorder %s22, 0
        %s234 = scalar_select %p233, %s22, 0
        %s235 = scalar_lea.vmem %s2, %s234
        %s236 = smul.u32 16, %s21
        %p237 = scmp.lt.s32.totalorder %s236, 63
        %s238 = scalar_select %p237, %s236, 63
        %p239 = scmp.lt.s32.totalorder %s22, 0
        %s240 = scalar_select %p239, %s22, 0
        %s241 = sadd.s32 %s240, %s238
        %s242 = smul.addr %s241, 4
        %s243 = scalar_lea.vmem %s3, %s242
        %s244 = smul.u32 16, %s21
        %v246 = vld [vmem:[%s195] sm:$0xff]
        %v247 = vld [vmem:[%s195 + $0x8] sm:$0xff]
        %v248 = vld [vmem:[%s195 + $0x10] sm:$0xff]
        %v249 = vld [vmem:[%s195 + $0x18] sm:$0xff]
        %v250 = vld [vmem:[%s195 + $0x20] sm:$0xff]
        %v251 = vld [vmem:[%s195 + $0x28] sm:$0xff]
        %v252 = vld [vmem:[%s195 + $0x30] sm:$0xff]
        %v253 = vld [vmem:[%s195 + $0x38] sm:$0xff]
        %v254 = vld [vmem:[%s195 + $0x40] sm:$0xff]
        %v255 = vld [vmem:[%s195 + $0x48] sm:$0xff]
        %v256 = vld [vmem:[%s195 + $0x50] sm:$0xff]
        %v257 = vld [vmem:[%s195 + $0x58] sm:$0xff]
        %v258 = vld [vmem:[%s195 + $0x60] sm:$0xff]
        %v259 = vld [vmem:[%s195 + $0x68] sm:$0xff]
        %v260 = vld [vmem:[%s195 + $0x70] sm:$0xff]
        %v261 = vld [vmem:[%s195 + $0x78] sm:$0xff]
        %v262 = vld [vmem:[%s232] sm:$0xf]
        %v263 = vld [vmem:[%s232 + $0x4] sm:$0xf]
        %v264 = vld [vmem:[%s232 + $0x8] sm:$0xf]
        %v265 = vld [vmem:[%s232 + $0xc] sm:$0xf]
        %v266 = vld [vmem:[%s232 + $0x10] sm:$0xf]
        %v267 = vld [vmem:[%s232 + $0x14] sm:$0xf]
        %v268 = vld [vmem:[%s232 + $0x18] sm:$0xf]
        %v269 = vld [vmem:[%s232 + $0x1c] sm:$0xf]
        %v270 = vld [vmem:[%s232 + $0x20] sm:$0xf]
        %v271 = vld [vmem:[%s232 + $0x24] sm:$0xf]
        %v272 = vld [vmem:[%s232 + $0x28] sm:$0xf]
        %v273 = vld [vmem:[%s232 + $0x2c] sm:$0xf]
        %v274 = vld [vmem:[%s232 + $0x30] sm:$0xf]
        %v275 = vld [vmem:[%s232 + $0x34] sm:$0xf]
        %v276 = vld [vmem:[%s232 + $0x38] sm:$0xf]
        %v277 = vld [vmem:[%s232 + $0x3c] sm:$0xf]
        %v278 = vld [vmem:[%s232 + $0x40] sm:$0xf]
        %v279 = vld [vmem:[%s232 + $0x44] sm:$0xf]
        %v280 = vld [vmem:[%s232 + $0x48] sm:$0xf]
        %v281 = vld [vmem:[%s232 + $0x4c] sm:$0xf]
        %v282 = vld [vmem:[%s232 + $0x50] sm:$0xf]
        %v283 = vld [vmem:[%s232 + $0x54] sm:$0xf]
        %v284 = vld [vmem:[%s232 + $0x58] sm:$0xf]
        %v285 = vld [vmem:[%s232 + $0x5c] sm:$0xf]
        %v286 = vld [vmem:[%s232 + $0x60] sm:$0xf]
        %v287 = vld [vmem:[%s232 + $0x64] sm:$0xf]
        %v288 = vld [vmem:[%s232 + $0x68] sm:$0xf]
        %v289 = vld [vmem:[%s232 + $0x6c] sm:$0xf]
        %v290 = vld [vmem:[%s232 + $0x70] sm:$0xf]
        %v291 = vld [vmem:[%s232 + $0x74] sm:$0xf]
        %v292 = vld [vmem:[%s232 + $0x78] sm:$0xf]
        %v293 = vld [vmem:[%s232 + $0x7c] sm:$0xf]
        %v294 = vld [vmem:[%s235] sm:$0x1]
        %v296 = vlaneseq
        %v297 = vshrl.u32 %v296, 7
        %v298 = vsub.s32 0, %v297
        %v299 = vrot.slane %v294, %v298
        %v317 = vunpack.c.l.b16 %v246
        %v318 = vunpack.c.h.b16 %v246
        %v319 = vunpack.c.l.b16 %v247
        %v320 = vunpack.c.h.b16 %v247
        %v321 = vunpack.c.l.b16 %v248
        %v322 = vunpack.c.h.b16 %v248
        %v323 = vunpack.c.l.b16 %v249
        %v324 = vunpack.c.h.b16 %v249
        %v325 = vunpack.c.l.b16 %v250
        %v326 = vunpack.c.h.b16 %v250
        %v327 = vunpack.c.l.b16 %v251
        %v328 = vunpack.c.h.b16 %v251
        %v329 = vunpack.c.l.b16 %v252
        %v330 = vunpack.c.h.b16 %v252
        %v331 = vunpack.c.l.b16 %v253
        %v332 = vunpack.c.h.b16 %v253
        %v333 = vunpack.c.l.b16 %v254
        %v334 = vunpack.c.h.b16 %v254
        %v335 = vunpack.c.l.b16 %v255
        %v336 = vunpack.c.h.b16 %v255
        %v337 = vunpack.c.l.b16 %v256
        %v338 = vunpack.c.h.b16 %v256
        %v339 = vunpack.c.l.b16 %v257
        %v340 = vunpack.c.h.b16 %v257
        %v341 = vunpack.c.l.b16 %v258
        %v342 = vunpack.c.h.b16 %v258
        %v343 = vunpack.c.l.b16 %v259
        %v344 = vunpack.c.h.b16 %v259
        %v345 = vunpack.c.l.b16 %v260
        %v346 = vunpack.c.h.b16 %v260
        %v347 = vunpack.c.l.b16 %v261
        %v348 = vunpack.c.h.b16 %v261
        %v349 = vpack.c.b16 %v319, %v317
        %v350 = vpack.c.b16 %v320, %v318
        %v351 = vpack.c.b16 %v323, %v321
        %v352 = vpack.c.b16 %v324, %v322
        %v353 = vpack.c.b16 %v327, %v325
        %v354 = vpack.c.b16 %v328, %v326
        %v355 = vpack.c.b16 %v331, %v329
        %v356 = vpack.c.b16 %v332, %v330
        %v357 = vpack.c.b16 %v335, %v333
        %v358 = vpack.c.b16 %v336, %v334
        %v359 = vpack.c.b16 %v339, %v337
        %v360 = vpack.c.b16 %v340, %v338
        %v361 = vpack.c.b16 %v343, %v341
        %v362 = vpack.c.b16 %v344, %v342
        %v363 = vpack.c.b16 %v347, %v345
        %v364 = vpack.c.b16 %v348, %v346
        %v413 = vunpack.c.l.b16 %v262
        %v414 = vunpack.c.l.b16 %v263
        %v415 = vunpack.c.l.b16 %v264
        %v416 = vunpack.c.l.b16 %v265
        %v417 = vunpack.c.l.b16 %v266
        %v418 = vunpack.c.l.b16 %v267
        %v419 = vunpack.c.l.b16 %v268
        %v420 = vunpack.c.l.b16 %v269
        %v421 = vunpack.c.l.b16 %v270
        %v422 = vunpack.c.l.b16 %v271
        %v423 = vunpack.c.l.b16 %v272
        %v424 = vunpack.c.l.b16 %v273
        %v425 = vunpack.c.l.b16 %v274
        %v426 = vunpack.c.l.b16 %v275
        %v427 = vunpack.c.l.b16 %v276
        %v428 = vunpack.c.l.b16 %v277
        %v429 = vunpack.c.l.b16 %v278
        %v430 = vunpack.c.l.b16 %v279
        %v431 = vunpack.c.l.b16 %v280
        %v432 = vunpack.c.l.b16 %v281
        %v433 = vunpack.c.l.b16 %v282
        %v434 = vunpack.c.l.b16 %v283
        %v435 = vunpack.c.l.b16 %v284
        %v436 = vunpack.c.l.b16 %v285
        %v437 = vunpack.c.l.b16 %v286
        %v438 = vunpack.c.l.b16 %v287
        %v439 = vunpack.c.l.b16 %v288
        %v440 = vunpack.c.l.b16 %v289
        %v441 = vunpack.c.l.b16 %v290
        %v442 = vunpack.c.l.b16 %v291
        %v443 = vunpack.c.l.b16 %v292
        %v444 = vunpack.c.l.b16 %v293
        %v445 = vpack.c.b16 %v414, %v413
        %v446 = vpack.c.b16 %v416, %v415
        %v447 = vpack.c.b16 %v418, %v417
        %v448 = vpack.c.b16 %v420, %v419
        %v449 = vpack.c.b16 %v422, %v421
        %v450 = vpack.c.b16 %v424, %v423
        %v451 = vpack.c.b16 %v426, %v425
        %v452 = vpack.c.b16 %v428, %v427
        %v453 = vpack.c.b16 %v430, %v429
        %v454 = vpack.c.b16 %v432, %v431
        %v455 = vpack.c.b16 %v434, %v433
        %v456 = vpack.c.b16 %v436, %v435
        %v457 = vpack.c.b16 %v438, %v437
        %v458 = vpack.c.b16 %v440, %v439
        %v459 = vpack.c.b16 %v442, %v441
        %v460 = vpack.c.b16 %v444, %v443
        %477 = vmatprep.subr.bf16.mxu0 0
        %478 = vmatpush1.bf16.msra.mxu0 %v452
        %479 = vmatprep.subr.bf16.mxu0 0
        %480 = vmatpush1.bf16.msra.mxu0 %v451
        %481 = vmatprep.subr.bf16.mxu0 0
        %482 = vmatpush1.bf16.msra.mxu0 %v450
        %483 = vmatprep.subr.bf16.mxu0 0
        %484 = vmatpush1.bf16.msra.mxu0 %v449
        %485 = vmatprep.subr.bf16.mxu0 0
        %486 = vmatpush1.bf16.msra.mxu0 %v448
        %487 = vmatprep.subr.bf16.mxu0 0
        %488 = vmatpush1.bf16.msra.mxu0 %v447
        %489 = vmatprep.subr.bf16.mxu0 0
        %490 = vmatpush1.bf16.msra.mxu0 %v446
        %491 = vmatprep.subr.bf16.mxu0 0
        %492 = vmatpush1.bf16.msra.mxu0 %v445
        %493 = vmatprep.subr.bf16.mxu0 0
        %494 = vmatpush2.bf16.msra.mxu0 %v460
        %495 = vmatprep.subr.bf16.mxu0 0
        %496 = vmatpush2.bf16.msra.mxu0 %v459
        %497 = vmatprep.subr.bf16.mxu0 0
        %498 = vmatpush2.bf16.msra.mxu0 %v458
        %499 = vmatprep.subr.bf16.mxu0 0
        %500 = vmatpush2.bf16.msra.mxu0 %v457
        %501 = vmatprep.subr.bf16.mxu0 0
        %502 = vmatpush2.bf16.msra.mxu0 %v456
        %503 = vmatprep.subr.bf16.mxu0 0
        %504 = vmatpush2.bf16.msra.mxu0 %v455
        %505 = vmatprep.subr.bf16.mxu0 0
        %506 = vmatpush2.bf16.msra.mxu0 %v454
        %507 = vmatprep.subr.bf16.mxu0 0
        %508 = vmatpush2.bf16.msra.mxu0 %v453
        %509 = vmatprep.mubr.bf16.mxu0 %v350
        %510 = vmatmul.mubr.bf16.gmra.mxu0 %v349
        %v511 = vpop.f32.mrf.mxu0
        %v512 = vadd.f32 %v299, %v511
        %v513 = vpop.f32.mrf.mxu0
        %v514 = vpop.f32.mrf.mxu0
        %v515 = vadd.f32 %v299, %v514
        %v516 = vpop.f32.mrf.mxu0
        %517 = vmatprep.mubr.bf16.mxu0 %v352
        %518 = vmatmul.mubr.bf16.gmra.mxu0 %v351
        %v519 = vpop.f32.mrf.mxu0
        %v520 = vadd.f32 %v299, %v519
        %v521 = vpop.f32.mrf.mxu0
        %v522 = vpop.f32.mrf.mxu0
        %v523 = vadd.f32 %v299, %v522
        %v524 = vpop.f32.mrf.mxu0
        %525 = vmatprep.mubr.bf16.mxu0 %v354
        %526 = vmatmul.mubr.bf16.gmra.mxu0 %v353
        %v527 = vpop.f32.mrf.mxu0
        %v528 = vadd.f32 %v299, %v527
        %v529 = vpop.f32.mrf.mxu0
        %v530 = vpop.f32.mrf.mxu0
        %v531 = vadd.f32 %v299, %v530
        %v532 = vpop.f32.mrf.mxu0
        %533 = vmatprep.mubr.bf16.mxu0 %v356
        %534 = vmatmul.mubr.bf16.gmra.mxu0 %v355
        %v535 = vpop.f32.mrf.mxu0
        %v536 = vadd.f32 %v299, %v535
        %v537 = vpop.f32.mrf.mxu0
        %v538 = vpop.f32.mrf.mxu0
        %v539 = vadd.f32 %v299, %v538
        %v540 = vpop.f32.mrf.mxu0
        %541 = vmatprep.mubr.bf16.mxu0 %v358
        %542 = vmatmul.mubr.bf16.gmra.mxu0 %v357
        %v543 = vpop.f32.mrf.mxu0
        %v544 = vadd.f32 %v299, %v543
        %v545 = vpop.f32.mrf.mxu0
        %v546 = vpop.f32.mrf.mxu0
        %v547 = vadd.f32 %v299, %v546
        %v548 = vpop.f32.mrf.mxu0
        %549 = vmatprep.mubr.bf16.mxu0 %v360
        %550 = vmatmul.mubr.bf16.gmra.mxu0 %v359
        %v551 = vpop.f32.mrf.mxu0
        %v552 = vadd.f32 %v299, %v551
        %v553 = vpop.f32.mrf.mxu0
        %v554 = vpop.f32.mrf.mxu0
        %v555 = vadd.f32 %v299, %v554
        %v556 = vpop.f32.mrf.mxu0
        %557 = vmatprep.mubr.bf16.mxu0 %v362
        %558 = vmatmul.mubr.bf16.gmra.mxu0 %v361
        %v559 = vpop.f32.mrf.mxu0
        %v560 = vadd.f32 %v299, %v559
        %v561 = vpop.f32.mrf.mxu0
        %v562 = vpop.f32.mrf.mxu0
        %v563 = vadd.f32 %v299, %v562
        %v564 = vpop.f32.mrf.mxu0
        %565 = vmatprep.mubr.bf16.mxu0 %v364
        %566 = vmatmul.mubr.bf16.gmra.mxu0 %v363
        %v567 = vpop.f32.mrf.mxu0
        %v568 = vadd.f32 %v299, %v567
        %v569 = vpop.f32.mrf.mxu0
        %v570 = vpop.f32.mrf.mxu0
        %v571 = vadd.f32 %v299, %v570
        %v572 = vpop.f32.mrf.mxu0
        %573 = vdwg.mxu0
        %v574 = vmax.f32 %v512, 0.0
        %v575 = vmax.f32 %v515, 0.0
        %v576 = vmax.f32 %v520, 0.0
        %v577 = vmax.f32 %v523, 0.0
        %v578 = vmax.f32 %v528, 0.0
        %v579 = vmax.f32 %v531, 0.0
        %v580 = vmax.f32 %v536, 0.0
        %v581 = vmax.f32 %v539, 0.0
        %v582 = vmax.f32 %v544, 0.0
        %v583 = vmax.f32 %v547, 0.0
        %v584 = vmax.f32 %v552, 0.0
        %v585 = vmax.f32 %v555, 0.0
        %v586 = vmax.f32 %v560, 0.0
        %v587 = vmax.f32 %v563, 0.0
        %v588 = vmax.f32 %v568, 0.0
        %v589 = vmax.f32 %v571, 0.0
        %v590 = vpack.c.bf16 %v575, %v574
        %v591 = vpack.c.bf16 %v577, %v576
        %v592 = vpack.c.bf16 %v579, %v578
        %v593 = vpack.c.bf16 %v581, %v580
        %v594 = vpack.c.bf16 %v583, %v582
        %v595 = vpack.c.bf16 %v585, %v584
        %v596 = vpack.c.bf16 %v587, %v586
        %v597 = vpack.c.bf16 %v589, %v588
        %v606 = vunpack.c.l.b16 %v590
        %v607 = vunpack.c.h.b16 %v590
        %v608 = vunpack.c.l.b16 %v591
        %v609 = vunpack.c.h.b16 %v591
        %v610 = vunpack.c.l.b16 %v592
        %v611 = vunpack.c.h.b16 %v592
        %v612 = vunpack.c.l.b16 %v593
        %v613 = vunpack.c.h.b16 %v593
        %v614 = vunpack.c.l.b16 %v594
        %v615 = vunpack.c.h.b16 %v594
        %v616 = vunpack.c.l.b16 %v595
        %v617 = vunpack.c.h.b16 %v595
        %v618 = vunpack.c.l.b16 %v596
        %v619 = vunpack.c.h.b16 %v596
        %v620 = vunpack.c.l.b16 %v597
        %v621 = vunpack.c.h.b16 %v597
        %v622 = vpack.c.b16 %v606, %v606
        %v623 = vpack.c.b16 %v607, %v607
        %v624 = vpack.c.b16 %v608, %v608
        %v625 = vpack.c.b16 %v609, %v609
        %v626 = vpack.c.b16 %v610, %v610
        %v627 = vpack.c.b16 %v611, %v611
        %v628 = vpack.c.b16 %v612, %v612
        %v629 = vpack.c.b16 %v613, %v613
        %v630 = vpack.c.b16 %v614, %v614
        %v631 = vpack.c.b16 %v615, %v615
        %v632 = vpack.c.b16 %v616, %v616
        %v633 = vpack.c.b16 %v617, %v617
        %v634 = vpack.c.b16 %v618, %v618
        %v635 = vpack.c.b16 %v619, %v619
        %v636 = vpack.c.b16 %v620, %v620
        %v637 = vpack.c.b16 %v621, %v621
        %vm654 = vcmask 519168
        %655 = vst.msk [vmem:[%s243] sm:$0xf] %vm654, %v622
        %656 = vst.msk [vmem:[%s243 + $0x4] sm:$0xf] %vm654, %v623
        %657 = vst.msk [vmem:[%s243 + $0x8] sm:$0xf] %vm654, %v624
        %658 = vst.msk [vmem:[%s243 + $0xc] sm:$0xf] %vm654, %v625
        %659 = vst.msk [vmem:[%s243 + $0x10] sm:$0xf] %vm654, %v626
        %660 = vst.msk [vmem:[%s243 + $0x14] sm:$0xf] %vm654, %v627
        %661 = vst.msk [vmem:[%s243 + $0x18] sm:$0xf] %vm654, %v628
        %662 = vst.msk [vmem:[%s243 + $0x1c] sm:$0xf] %vm654, %v629
        %663 = vst.msk [vmem:[%s243 + $0x20] sm:$0xf] %vm654, %v630
        %664 = vst.msk [vmem:[%s243 + $0x24] sm:$0xf] %vm654, %v631
        %665 = vst.msk [vmem:[%s243 + $0x28] sm:$0xf] %vm654, %v632
        %666 = vst.msk [vmem:[%s243 + $0x2c] sm:$0xf] %vm654, %v633
        %667 = vst.msk [vmem:[%s243 + $0x30] sm:$0xf] %vm654, %v634
        %668 = vst.msk [vmem:[%s243 + $0x34] sm:$0xf] %vm654, %v635
        %669 = vst.msk [vmem:[%s243 + $0x38] sm:$0xf] %vm654, %v636
        %670 = vst.msk [vmem:[%s243 + $0x3c] sm:$0xf] %vm654, %v637
        %s671 = smul.u32 16, %s21
        %p672 = scmp.lt.s32.totalorder %s671, 63
        %s673 = scalar_select %p672, %s671, 63
        %p674 = scmp.lt.s32.totalorder %s22, 0
        %s675 = scalar_select %p674, %s22, 0
        %s676 = sadd.s32 %s675, %s673
        %s677 = smul.addr %s676, 4
        %s678 = scalar_lea.vmem %s3, %s677
        // Predicated region
        $region37: #{tpu_custom_call.1} parent=31 // pred_check
          %p679 = pneg %p127
        $region38: #{tpu_custom_call.1} parent=31 // pred_check_branch
          %681 = sbr.rel (%p679) target = $region40
        $region39: #{tpu_custom_call.1} parent=31 // pred_region
          %s682 = smul.u32 16, %s21
        $region40: #{tpu_custom_call.1} parent=31 // pred_fallthru
          _
      $region32: #{tpu_custom_call.1} parent=5 // pred_fallthru
        _
      %p683 = scmp.le.s32.totalorder 2, %s12
      // Predicated region
      $region41: #{tpu_custom_call.1} parent=5 // pred_check
        %p684 = pneg %p683
      $region42: #{tpu_custom_call.1} parent=5 // pred_check_branch
        %686 = sbr.rel (%p684) target = $region44
      $region43: #{tpu_custom_call.1} parent=5 // pred_region
        %s687 = ssub.s32 %s12, 2
        // Predicated region
        $region45: #{tpu_custom_call.1} parent=43 // pred_check
          %p688 = pneg %p133
        $region46: #{tpu_custom_call.1} parent=43 // pred_check_branch
          %690 = sbr.rel (%p688) target = $region48
        $region47: #{tpu_custom_call.1} parent=43 // pred_region
          %s691 = smul.u32 16, %s23
          %p692 = scmp.lt.s32.totalorder %s691, 63
          %s693 = scalar_select %p692, %s691, 63
          %p694 = scmp.lt.s32.totalorder %s24, 0
          %s695 = scalar_select %p694, %s24, 0
          %s696 = sadd.s32 %s695, %s693
          %s697 = smul.addr %s696, 4
          %s698 = scalar_lea.vmem %s3, %s697
        $region48: #{tpu_custom_call.1} parent=43 // pred_fallthru
          _
      $region44: #{tpu_custom_call.1} parent=5 // pred_fallthru
        _
    $region6: #{tpu_custom_call.1} parent=1 // loop_footer
      %s16 = sadd.s32 1, %s12
    $region7: #{tpu_custom_call.1} parent=1 // loop_footer_branch
      %11 = sbr.rel target = $region3
    $region8: #{tpu_custom_call.1} parent=1 // loop_exit
      _
    %699 = vsyncpa [#allocation3], 1
    %s700 = scalar_lea.sflag [#allocation3], 1
    %701 = vsyncpa %s700, 1

</llo_original>
